<compile_context>
chip_gen: v6e
topology: v6e:2x2x1
jax: 0.10.0
libtpu: 0.0.40
codegen_flags: <defaults>
</compile_context>

<pallas_src>
import functools
from math import ceil

import jax
import jax.numpy as jnp
from jax import lax
from jax.experimental import pallas as pl
from jax.experimental.pallas import tpu as pltpu


# --------------------------------------------------------------------------- #
# Pallas kernel
# --------------------------------------------------------------------------- #
def _xcorr_loss_kernel(x_ref, y_ref, out_ref, *, scale, H, W):
    """One (batch, band) grid step, full spatial extent.

    x_ref, y_ref : (1, 1, H, W) blocks in the caller's native dtype
    out_ref      : (1, 1, 1, W) f32 row-summed partials of X = 1 - |clamp(xcorr, -1)|
    """
    w = scale
    inv_n = 1.0 / float((2 * w) * (2 * w))
    ep = 1e-20
    offsets = [d for d in range(1 - w, w + 1) if d != 0]   # window offsets, d=0 is identity

    x = x_ref[0, 0].astype(jnp.float32)   # (H, W)
    y = y_ref[0, 0].astype(jnp.float32)

    # Hoisted once per step: validity masks for the zero-padded window shifts
    # (reused by all 5 box() calls; pure VPU compares, no constant DMA blocks).
    col_idx = lax.broadcasted_iota(jnp.int32, (H, W), 1)
    row_idx = lax.broadcasted_iota(jnp.int32, (H, W), 0)
    zero = jnp.zeros((H, W), jnp.float32)
    col_mask = {d: (col_idx + d >= 0) & (col_idx + d < W) for d in offsets}
    row_mask = {d: (row_idx + d >= 0) & (row_idx + d < H) for d in offsets}

    def sliding_sum(m, axis, n, masks):
        # out[i] = sum_{d=1-w}^{w} m[i+d]  (zero-padded); pltpu.roll matches
        # jnp.roll semantics: roll(m, s)[j] = m[(j - s) mod n], so s = -d mod n.
        acc = m                                   # d == 0 term (always valid)
        for d in offsets:
            shifted = pltpu.roll(m, shift=(-d) % n, axis=axis)
            acc = acc + jnp.where(masks[d], shifted, zero)
        return acc

    def box(m):
        m = sliding_sum(m, axis=1, n=W, masks=col_mask)      # lane direction
        return sliding_sum(m, axis=0, n=H, masks=row_mask)   # sublane direction

    mu_x = box(x) * inv_n          # zero-padded local means, / (2w)^2
    mu_y = box(y) * inv_n
    dx = x - mu_x
    dy = y - mu_y

    s_xx = box(dx * dx)            # local (co)variance sums (NOT the raw-moment form)
    s_yy = box(dy * dy)
    s_xy = box(dx * dy)

    # Fused sqrt + divide on the EUP: one rsqrt per pixel.
    xcorr = s_xy * lax.rsqrt(jnp.maximum(s_xx, ep) * jnp.maximum(s_yy, ep))
    xcorr = jnp.maximum(xcorr, -1.0)               # torch.clamp(min=-1)
    xmap = 1.0 - jnp.abs(xcorr)                    # X = 1 - |X_corr|

    # Sublane-direction reduce only; the cross-lane reduce and the mean happen
    # once in the JAX glue.
    out_ref[...] = jnp.sum(xmap, axis=0, keepdims=True)[None, None]   # (1, 1, 1, W)


# --------------------------------------------------------------------------- #
# Wrapper
# --------------------------------------------------------------------------- #
def ccorr_loss_pallas(outputs, labels, scale):
    """mean over (B, C, H, W) of 1 - |clamp(ccorr(outputs, labels, scale), -1)|."""
    B, C, H, W = outputs.shape
    assert labels.shape == (B, C, H, W)
    w = int(scale)
    assert w >= 1 and 2 * w <= min(H, W)

    kernel = functools.partial(_xcorr_loss_kernel, scale=w, H=H, W=W)

    # VMEM budget from the real footprint: 2 inputs x 2 pipeline buffers per
    # block + ~16 live (H, W) f32 temporaries + slack, capped by chip VMEM.
    in_itemsize = jnp.dtype(outputs.dtype).itemsize
    needed = 2 * 2 * H * W * in_itemsize + 16 * H * W * 4 + (2 << 20)
    try:
        cap = int(pltpu.get_tpu_info().vmem_capacity_bytes) * 3 // 4
    except Exception:  # fall back to the most conservative (v7x) ceiling
        cap = 48 * 1024 * 1024
    vmem_limit = int(min(max(needed, 4 << 20), min(cap, 100 << 20)))

    # Advisory cost: ~3 ops per shift, 2*(2w-1) shifts per box, 5 boxes, plus
    # ~20 elementwise ops and one rsqrt per pixel.
    flops_per_px = 5 * 2 * 3 * (2 * w - 1) + 20
    cost = pl.CostEstimate(
        flops=int(B * C * H * W * flops_per_px),
        transcendentals=int(B * C * H * W),
        bytes_accessed=int(2 * B * C * H * W * in_itemsize + B * C * W * 4),
    )

    partial_sums = pl.pallas_call(
        kernel,
        out_shape=jax.ShapeDtypeStruct((B, C, 1, W), jnp.float32),
        grid=(B, C),
        in_specs=[
            pl.BlockSpec((1, 1, H, W), lambda b, c: (b, c, 0, 0)),   # outputs (native dtype)
            pl.BlockSpec((1, 1, H, W), lambda b, c: (b, c, 0, 0)),   # labels
        ],
        out_specs=pl.BlockSpec((1, 1, 1, W), lambda b, c: (b, c, 0, 0)),   # distinct block/step
        compiler_params=pltpu.CompilerParams(
            dimension_semantics=("parallel", "parallel"),            # megacore shards (B, C)
            vmem_limit_bytes=vmem_limit,
        ),
        cost_estimate=cost,
    )(outputs, labels)

    return jnp.sum(partial_sums) / float(B * C * H * W)


class StructuralLossPallas:
    """Pallas-TPU port of the PyTorch StructuralLoss module."""

    def __init__(self, sigma):
        self.scale = ceil(sigma / 2)

    def __call__(self, outputs, labels, xcorr_thr):
        # `worst = X.gt(xcorr_thr)` never affects the returned values (Y = X),
        # so xcorr_thr is accepted only for API parity.
        del xcorr_thr
        lxcorr = ccorr_loss_pallas(outputs, labels, self.scale)
        lxcorr_no_weights = lax.stop_gradient(lxcorr)   # torch.no_grad() analogue
        return lxcorr, float(lxcorr_no_weights)          # .item() analogue (host sync)


# --------------------------------------------------------------------------- #
# Pure-JAX reference (mirrors the PyTorch forward) for verification
# --------------------------------------------------------------------------- #
def structural_loss_reference(outputs, labels, scale, xcorr_thr):
    del xcorr_thr
    x = outputs.astype(jnp.float32)
    y = labels.astype(jnp.float32)
    C = x.shape[1]
    w = int(scale)
    k = 2 * w
    ep = 1e-20
    dn = ("NCHW", "OIHW", "NCHW")
    ones = jnp.ones((C, 1, k, k), jnp.float32)
    pad = [(w - 1, w), (w - 1, w)]

    def box(t):
        return lax.conv_general_dilated(
            t, ones, (1, 1), pad, dimension_numbers=dn, feature_group_count=C,
            precision=lax.Precision.HIGHEST)

    n = float(k * k)
    mu_x, mu_y = box(x) / n, box(y) / n
    dx, dy = x - mu_x, y - mu_y
    s_xx, s_yy, s_xy = box(dx * dx), box(dy * dy), box(dx * dy)
    denom = jnp.sqrt(jnp.maximum(s_xx, ep) * jnp.maximum(s_yy, ep)) + ep
    xcorr = jnp.maximum(s_xy / denom, -1.0)
    xmap = 1.0 - jnp.abs(xcorr)
    lx = jnp.mean(xmap)
    return lx, lx


if __name__ == "__main__":
    # small synthetic problem: batch=2, nbands=4, spatial=24, sigma=4 -> 4x4 windows
    B, C, H, W = 2, 4, 24, 24
    sigma = 4.0
    xcorr_thr = 0.5

    key = jax.random.PRNGKey(0)
    k_out, k_lab = jax.random.split(key)
    outputs = jax.random.uniform(k_out, (B, C, H, W), jnp.float32)
    # labels partially correlated with outputs so the correlation field is non-trivial
    labels = 0.7 * outputs + 0.3 * jax.random.uniform(k_lab, (B, C, H, W), jnp.float32)

    loss_mod = StructuralLossPallas(sigma)
    lxcorr, lxcorr_no_weights = loss_mod(outputs, labels, xcorr_thr)
    lxcorr = jax.block_until_ready(lxcorr)

    ref_lxcorr, _ = structural_loss_reference(outputs, labels, loss_mod.scale, xcorr_thr)
    ref_lxcorr = jax.block_until_ready(ref_lxcorr)

    # tolerance budget: rsqrt-vs-(sqrt,div,+ep) and summation order differences
    assert jnp.allclose(lxcorr, ref_lxcorr, rtol=5e-3, atol=1e-3), (
        float(lxcorr), float(ref_lxcorr))
    assert abs(lxcorr_no_weights - float(lxcorr)) < 1e-6

    print("KERNEL_OK")
</pallas_src>

<mosaic_0001>
module attributes {stable_mosaic.version = 11 : i64} {
  func.func @_xcorr_loss_kernel(%arg0: i32, %arg1: i32, %arg2: memref<1x1x24x24xf32, #tpu.memory_space<vmem>>, %arg3: memref<1x1x24x24xf32, #tpu.memory_space<vmem>>, %arg4: memref<1x1x1x24xf32, #tpu.memory_space<vmem>>) attributes {dimension_semantics = [#tpu.dimension_semantics<parallel>, #tpu.dimension_semantics<parallel>], iteration_bounds = array<i64: 2, 4>, scalar_prefetch = 0 : i64, scratch_operands = 0 : i64, tpu.core_type = #tpu.core_type<tc>, window_params = [{transform_indices = @transform_0, window_bounds = array<i64: 1, 1, 24, 24>}, {transform_indices = @transform_1, window_bounds = array<i64: 1, 1, 24, 24>}, {transform_indices = @transform_2, window_bounds = array<i64: 1, 1, 1, 24>}]} {
    %c0 = arith.constant 0 : index
    %c0_0 = arith.constant 0 : index
    %c0_1 = arith.constant 0 : index
    %c0_2 = arith.constant 0 : index
    %0 = vector.load %arg2[%c0, %c0_0, %c0_1, %c0_2] : memref<1x1x24x24xf32, #tpu.memory_space<vmem>>, vector<1x1x24x24xf32>
    %1 = vector.shape_cast %0 : vector<1x1x24x24xf32> to vector<24x24xf32>
    %c0_3 = arith.constant 0 : index
    %c0_4 = arith.constant 0 : index
    %c0_5 = arith.constant 0 : index
    %c0_6 = arith.constant 0 : index
    %2 = vector.load %arg3[%c0_3, %c0_4, %c0_5, %c0_6] : memref<1x1x24x24xf32, #tpu.memory_space<vmem>>, vector<1x1x24x24xf32>
    %3 = vector.shape_cast %2 : vector<1x1x24x24xf32> to vector<24x24xf32>
    %4 = tpu.iota {dimensions = array<i32: 1>} : vector<24x24xi32>
    %5 = tpu.iota {dimensions = array<i32: 0>} : vector<24x24xi32>
    %cst = arith.constant 0.000000e+00 : f32
    %6 = vector.broadcast %cst : f32 to vector<24x24xf32>
    %c-1_i32 = arith.constant -1 : i32
    %7 = vector.broadcast %c-1_i32 : i32 to vector<24x24xi32>
    %8 = arith.addi %4, %7 : vector<24x24xi32>
    %c0_i32 = arith.constant 0 : i32
    %9 = vector.broadcast %c0_i32 : i32 to vector<24x24xi32>
    %10 = arith.cmpi sge, %8, %9 : vector<24x24xi32>
    %c-1_i32_7 = arith.constant -1 : i32
    %11 = vector.broadcast %c-1_i32_7 : i32 to vector<24x24xi32>
    %12 = arith.addi %4, %11 : vector<24x24xi32>
    %c24_i32 = arith.constant 24 : i32
    %13 = vector.broadcast %c24_i32 : i32 to vector<24x24xi32>
    %14 = arith.cmpi slt, %12, %13 : vector<24x24xi32>
    %15 = arith.andi %10, %14 : vector<24x24xi1>
    %c1_i32 = arith.constant 1 : i32
    %16 = vector.broadcast %c1_i32 : i32 to vector<24x24xi32>
    %17 = arith.addi %4, %16 : vector<24x24xi32>
    %c0_i32_8 = arith.constant 0 : i32
    %18 = vector.broadcast %c0_i32_8 : i32 to vector<24x24xi32>
    %19 = arith.cmpi sge, %17, %18 : vector<24x24xi32>
    %c1_i32_9 = arith.constant 1 : i32
    %20 = vector.broadcast %c1_i32_9 : i32 to vector<24x24xi32>
    %21 = arith.addi %4, %20 : vector<24x24xi32>
    %c24_i32_10 = arith.constant 24 : i32
    %22 = vector.broadcast %c24_i32_10 : i32 to vector<24x24xi32>
    %23 = arith.cmpi slt, %21, %22 : vector<24x24xi32>
    %24 = arith.andi %19, %23 : vector<24x24xi1>
    %c2_i32 = arith.constant 2 : i32
    %25 = vector.broadcast %c2_i32 : i32 to vector<24x24xi32>
    %26 = arith.addi %4, %25 : vector<24x24xi32>
    %c0_i32_11 = arith.constant 0 : i32
    %27 = vector.broadcast %c0_i32_11 : i32 to vector<24x24xi32>
    %28 = arith.cmpi sge, %26, %27 : vector<24x24xi32>
    %c2_i32_12 = arith.constant 2 : i32
    %29 = vector.broadcast %c2_i32_12 : i32 to vector<24x24xi32>
    %30 = arith.addi %4, %29 : vector<24x24xi32>
    %c24_i32_13 = arith.constant 24 : i32
    %31 = vector.broadcast %c24_i32_13 : i32 to vector<24x24xi32>
    %32 = arith.cmpi slt, %30, %31 : vector<24x24xi32>
    %33 = arith.andi %28, %32 : vector<24x24xi1>
    %c-1_i32_14 = arith.constant -1 : i32
    %34 = vector.broadcast %c-1_i32_14 : i32 to vector<24x24xi32>
    %35 = arith.addi %5, %34 : vector<24x24xi32>
    %c0_i32_15 = arith.constant 0 : i32
    %36 = vector.broadcast %c0_i32_15 : i32 to vector<24x24xi32>
    %37 = arith.cmpi sge, %35, %36 : vector<24x24xi32>
    %c-1_i32_16 = arith.constant -1 : i32
    %38 = vector.broadcast %c-1_i32_16 : i32 to vector<24x24xi32>
    %39 = arith.addi %5, %38 : vector<24x24xi32>
    %c24_i32_17 = arith.constant 24 : i32
    %40 = vector.broadcast %c24_i32_17 : i32 to vector<24x24xi32>
    %41 = arith.cmpi slt, %39, %40 : vector<24x24xi32>
    %42 = arith.andi %37, %41 : vector<24x24xi1>
    %c1_i32_18 = arith.constant 1 : i32
    %43 = vector.broadcast %c1_i32_18 : i32 to vector<24x24xi32>
    %44 = arith.addi %5, %43 : vector<24x24xi32>
    %c0_i32_19 = arith.constant 0 : i32
    %45 = vector.broadcast %c0_i32_19 : i32 to vector<24x24xi32>
    %46 = arith.cmpi sge, %44, %45 : vector<24x24xi32>
    %c1_i32_20 = arith.constant 1 : i32
    %47 = vector.broadcast %c1_i32_20 : i32 to vector<24x24xi32>
    %48 = arith.addi %5, %47 : vector<24x24xi32>
    %c24_i32_21 = arith.constant 24 : i32
    %49 = vector.broadcast %c24_i32_21 : i32 to vector<24x24xi32>
    %50 = arith.cmpi slt, %48, %49 : vector<24x24xi32>
    %51 = arith.andi %46, %50 : vector<24x24xi1>
    %c2_i32_22 = arith.constant 2 : i32
    %52 = vector.broadcast %c2_i32_22 : i32 to vector<24x24xi32>
    %53 = arith.addi %5, %52 : vector<24x24xi32>
    %c0_i32_23 = arith.constant 0 : i32
    %54 = vector.broadcast %c0_i32_23 : i32 to vector<24x24xi32>
    %55 = arith.cmpi sge, %53, %54 : vector<24x24xi32>
    %c2_i32_24 = arith.constant 2 : i32
    %56 = vector.broadcast %c2_i32_24 : i32 to vector<24x24xi32>
    %57 = arith.addi %5, %56 : vector<24x24xi32>
    %c24_i32_25 = arith.constant 24 : i32
    %58 = vector.broadcast %c24_i32_25 : i32 to vector<24x24xi32>
    %59 = arith.cmpi slt, %57, %58 : vector<24x24xi32>
    %60 = arith.andi %55, %59 : vector<24x24xi1>
    %c1_i32_26 = arith.constant 1 : i32
    %61 = tpu.dynamic_rotate %1 by %c1_i32_26 dim 1 : vector<24x24xf32>, i32 -> vector<24x24xf32>
    %62 = arith.select %15, %61, %6 : vector<24x24xi1>, vector<24x24xf32>
    %63 = arith.addf %1, %62 : vector<24x24xf32>
    %c23_i32 = arith.constant 23 : i32
    %64 = tpu.dynamic_rotate %1 by %c23_i32 dim 1 : vector<24x24xf32>, i32 -> vector<24x24xf32>
    %65 = arith.select %24, %64, %6 : vector<24x24xi1>, vector<24x24xf32>
    %66 = arith.addf %63, %65 : vector<24x24xf32>
    %c22_i32 = arith.constant 22 : i32
    %67 = tpu.dynamic_rotate %1 by %c22_i32 dim 1 : vector<24x24xf32>, i32 -> vector<24x24xf32>
    %68 = arith.select %33, %67, %6 : vector<24x24xi1>, vector<24x24xf32>
    %69 = arith.addf %66, %68 : vector<24x24xf32>
    %c1_i32_27 = arith.constant 1 : i32
    %70 = tpu.dynamic_rotate %69 by %c1_i32_27 dim 0 : vector<24x24xf32>, i32 -> vector<24x24xf32>
    %71 = arith.select %42, %70, %6 : vector<24x24xi1>, vector<24x24xf32>
    %72 = arith.addf %69, %71 : vector<24x24xf32>
    %c23_i32_28 = arith.constant 23 : i32
    %73 = tpu.dynamic_rotate %69 by %c23_i32_28 dim 0 : vector<24x24xf32>, i32 -> vector<24x24xf32>
    %74 = arith.select %51, %73, %6 : vector<24x24xi1>, vector<24x24xf32>
    %75 = arith.addf %72, %74 : vector<24x24xf32>
    %c22_i32_29 = arith.constant 22 : i32
    %76 = tpu.dynamic_rotate %69 by %c22_i32_29 dim 0 : vector<24x24xf32>, i32 -> vector<24x24xf32>
    %77 = arith.select %60, %76, %6 : vector<24x24xi1>, vector<24x24xf32>
    %78 = arith.addf %75, %77 : vector<24x24xf32>
    %cst_30 = arith.constant 6.250000e-02 : f32
    %79 = vector.broadcast %cst_30 : f32 to vector<24x24xf32>
    %80 = arith.mulf %78, %79 : vector<24x24xf32>
    %c1_i32_31 = arith.constant 1 : i32
    %81 = tpu.dynamic_rotate %3 by %c1_i32_31 dim 1 : vector<24x24xf32>, i32 -> vector<24x24xf32>
    %82 = arith.select %15, %81, %6 : vector<24x24xi1>, vector<24x24xf32>
    %83 = arith.addf %3, %82 : vector<24x24xf32>
    %c23_i32_32 = arith.constant 23 : i32
    %84 = tpu.dynamic_rotate %3 by %c23_i32_32 dim 1 : vector<24x24xf32>, i32 -> vector<24x24xf32>
    %85 = arith.select %24, %84, %6 : vector<24x24xi1>, vector<24x24xf32>
    %86 = arith.addf %83, %85 : vector<24x24xf32>
    %c22_i32_33 = arith.constant 22 : i32
    %87 = tpu.dynamic_rotate %3 by %c22_i32_33 dim 1 : vector<24x24xf32>, i32 -> vector<24x24xf32>
    %88 = arith.select %33, %87, %6 : vector<24x24xi1>, vector<24x24xf32>
    %89 = arith.addf %86, %88 : vector<24x24xf32>
    %c1_i32_34 = arith.constant 1 : i32
    %90 = tpu.dynamic_rotate %89 by %c1_i32_34 dim 0 : vector<24x24xf32>, i32 -> vector<24x24xf32>
    %91 = arith.select %42, %90, %6 : vector<24x24xi1>, vector<24x24xf32>
    %92 = arith.addf %89, %91 : vector<24x24xf32>
    %c23_i32_35 = arith.constant 23 : i32
    %93 = tpu.dynamic_rotate %89 by %c23_i32_35 dim 0 : vector<24x24xf32>, i32 -> vector<24x24xf32>
    %94 = arith.select %51, %93, %6 : vector<24x24xi1>, vector<24x24xf32>
    %95 = arith.addf %92, %94 : vector<24x24xf32>
    %c22_i32_36 = arith.constant 22 : i32
    %96 = tpu.dynamic_rotate %89 by %c22_i32_36 dim 0 : vector<24x24xf32>, i32 -> vector<24x24xf32>
    %97 = arith.select %60, %96, %6 : vector<24x24xi1>, vector<24x24xf32>
    %98 = arith.addf %95, %97 : vector<24x24xf32>
    %cst_37 = arith.constant 6.250000e-02 : f32
    %99 = vector.broadcast %cst_37 : f32 to vector<24x24xf32>
    %100 = arith.mulf %98, %99 : vector<24x24xf32>
    %101 = arith.subf %1, %80 : vector<24x24xf32>
    %102 = arith.subf %3, %100 : vector<24x24xf32>
    %103 = arith.mulf %101, %101 : vector<24x24xf32>
    %c1_i32_38 = arith.constant 1 : i32
    %104 = tpu.dynamic_rotate %103 by %c1_i32_38 dim 1 : vector<24x24xf32>, i32 -> vector<24x24xf32>
    %105 = arith.select %15, %104, %6 : vector<24x24xi1>, vector<24x24xf32>
    %106 = arith.addf %103, %105 : vector<24x24xf32>
    %c23_i32_39 = arith.constant 23 : i32
    %107 = tpu.dynamic_rotate %103 by %c23_i32_39 dim 1 : vector<24x24xf32>, i32 -> vector<24x24xf32>
    %108 = arith.select %24, %107, %6 : vector<24x24xi1>, vector<24x24xf32>
    %109 = arith.addf %106, %108 : vector<24x24xf32>
    %c22_i32_40 = arith.constant 22 : i32
    %110 = tpu.dynamic_rotate %103 by %c22_i32_40 dim 1 : vector<24x24xf32>, i32 -> vector<24x24xf32>
    %111 = arith.select %33, %110, %6 : vector<24x24xi1>, vector<24x24xf32>
    %112 = arith.addf %109, %111 : vector<24x24xf32>
    %c1_i32_41 = arith.constant 1 : i32
    %113 = tpu.dynamic_rotate %112 by %c1_i32_41 dim 0 : vector<24x24xf32>, i32 -> vector<24x24xf32>
    %114 = arith.select %42, %113, %6 : vector<24x24xi1>, vector<24x24xf32>
    %115 = arith.addf %112, %114 : vector<24x24xf32>
    %c23_i32_42 = arith.constant 23 : i32
    %116 = tpu.dynamic_rotate %112 by %c23_i32_42 dim 0 : vector<24x24xf32>, i32 -> vector<24x24xf32>
    %117 = arith.select %51, %116, %6 : vector<24x24xi1>, vector<24x24xf32>
    %118 = arith.addf %115, %117 : vector<24x24xf32>
    %c22_i32_43 = arith.constant 22 : i32
    %119 = tpu.dynamic_rotate %112 by %c22_i32_43 dim 0 : vector<24x24xf32>, i32 -> vector<24x24xf32>
    %120 = arith.select %60, %119, %6 : vector<24x24xi1>, vector<24x24xf32>
    %121 = arith.addf %118, %120 : vector<24x24xf32>
    %122 = arith.mulf %102, %102 : vector<24x24xf32>
    %c1_i32_44 = arith.constant 1 : i32
    %123 = tpu.dynamic_rotate %122 by %c1_i32_44 dim 1 : vector<24x24xf32>, i32 -> vector<24x24xf32>
    %124 = arith.select %15, %123, %6 : vector<24x24xi1>, vector<24x24xf32>
    %125 = arith.addf %122, %124 : vector<24x24xf32>
    %c23_i32_45 = arith.constant 23 : i32
    %126 = tpu.dynamic_rotate %122 by %c23_i32_45 dim 1 : vector<24x24xf32>, i32 -> vector<24x24xf32>
    %127 = arith.select %24, %126, %6 : vector<24x24xi1>, vector<24x24xf32>
    %128 = arith.addf %125, %127 : vector<24x24xf32>
    %c22_i32_46 = arith.constant 22 : i32
    %129 = tpu.dynamic_rotate %122 by %c22_i32_46 dim 1 : vector<24x24xf32>, i32 -> vector<24x24xf32>
    %130 = arith.select %33, %129, %6 : vector<24x24xi1>, vector<24x24xf32>
    %131 = arith.addf %128, %130 : vector<24x24xf32>
    %c1_i32_47 = arith.constant 1 : i32
    %132 = tpu.dynamic_rotate %131 by %c1_i32_47 dim 0 : vector<24x24xf32>, i32 -> vector<24x24xf32>
    %133 = arith.select %42, %132, %6 : vector<24x24xi1>, vector<24x24xf32>
    %134 = arith.addf %131, %133 : vector<24x24xf32>
    %c23_i32_48 = arith.constant 23 : i32
    %135 = tpu.dynamic_rotate %131 by %c23_i32_48 dim 0 : vector<24x24xf32>, i32 -> vector<24x24xf32>
    %136 = arith.select %51, %135, %6 : vector<24x24xi1>, vector<24x24xf32>
    %137 = arith.addf %134, %136 : vector<24x24xf32>
    %c22_i32_49 = arith.constant 22 : i32
    %138 = tpu.dynamic_rotate %131 by %c22_i32_49 dim 0 : vector<24x24xf32>, i32 -> vector<24x24xf32>
    %139 = arith.select %60, %138, %6 : vector<24x24xi1>, vector<24x24xf32>
    %140 = arith.addf %137, %139 : vector<24x24xf32>
    %141 = arith.mulf %101, %102 : vector<24x24xf32>
    %c1_i32_50 = arith.constant 1 : i32
    %142 = tpu.dynamic_rotate %141 by %c1_i32_50 dim 1 : vector<24x24xf32>, i32 -> vector<24x24xf32>
    %143 = arith.select %15, %142, %6 : vector<24x24xi1>, vector<24x24xf32>
    %144 = arith.addf %141, %143 : vector<24x24xf32>
    %c23_i32_51 = arith.constant 23 : i32
    %145 = tpu.dynamic_rotate %141 by %c23_i32_51 dim 1 : vector<24x24xf32>, i32 -> vector<24x24xf32>
    %146 = arith.select %24, %145, %6 : vector<24x24xi1>, vector<24x24xf32>
    %147 = arith.addf %144, %146 : vector<24x24xf32>
    %c22_i32_52 = arith.constant 22 : i32
    %148 = tpu.dynamic_rotate %141 by %c22_i32_52 dim 1 : vector<24x24xf32>, i32 -> vector<24x24xf32>
    %149 = arith.select %33, %148, %6 : vector<24x24xi1>, vector<24x24xf32>
    %150 = arith.addf %147, %149 : vector<24x24xf32>
    %c1_i32_53 = arith.constant 1 : i32
    %151 = tpu.dynamic_rotate %150 by %c1_i32_53 dim 0 : vector<24x24xf32>, i32 -> vector<24x24xf32>
    %152 = arith.select %42, %151, %6 : vector<24x24xi1>, vector<24x24xf32>
    %153 = arith.addf %150, %152 : vector<24x24xf32>
    %c23_i32_54 = arith.constant 23 : i32
    %154 = tpu.dynamic_rotate %150 by %c23_i32_54 dim 0 : vector<24x24xf32>, i32 -> vector<24x24xf32>
    %155 = arith.select %51, %154, %6 : vector<24x24xi1>, vector<24x24xf32>
    %156 = arith.addf %153, %155 : vector<24x24xf32>
    %c22_i32_55 = arith.constant 22 : i32
    %157 = tpu.dynamic_rotate %150 by %c22_i32_55 dim 0 : vector<24x24xf32>, i32 -> vector<24x24xf32>
    %158 = arith.select %60, %157, %6 : vector<24x24xi1>, vector<24x24xf32>
    %159 = arith.addf %156, %158 : vector<24x24xf32>
    %cst_56 = arith.constant 9.99999968E-21 : f32
    %160 = vector.broadcast %cst_56 : f32 to vector<24x24xf32>
    %161 = arith.maximumf %121, %160 : vector<24x24xf32>
    %cst_57 = arith.constant 9.99999968E-21 : f32
    %162 = vector.broadcast %cst_57 : f32 to vector<24x24xf32>
    %163 = arith.maximumf %140, %162 : vector<24x24xf32>
    %164 = arith.mulf %161, %163 : vector<24x24xf32>
    %165 = math.rsqrt %164 : vector<24x24xf32>
    %166 = arith.mulf %159, %165 : vector<24x24xf32>
    %cst_58 = arith.constant -1.000000e+00 : f32
    %167 = vector.broadcast %cst_58 : f32 to vector<24x24xf32>
    %168 = arith.maximumf %166, %167 : vector<24x24xf32>
    %169 = math.absf %168 : vector<24x24xf32>
    %cst_59 = arith.constant 1.000000e+00 : f32
    %170 = vector.broadcast %cst_59 : f32 to vector<24x24xf32>
    %171 = arith.subf %170, %169 : vector<24x24xf32>
    %cst_60 = arith.constant dense<0.000000e+00> : vector<24xf32>
    %172 = vector.multi_reduction <add>, %171, %cst_60 [0] : vector<24x24xf32> to vector<24xf32>
    %173 = vector.shape_cast %172 : vector<24xf32> to vector<1x24xf32>
    %174 = vector.shape_cast %173 : vector<1x24xf32> to vector<1x1x1x24xf32>
    %c0_61 = arith.constant 0 : index
    %c0_62 = arith.constant 0 : index
    %c0_63 = arith.constant 0 : index
    %c0_64 = arith.constant 0 : index
    %175 = vector.load %arg4[%c0_61, %c0_62, %c0_63, %c0_64] : memref<1x1x1x24xf32, #tpu.memory_space<vmem>>, vector<1x1x1x24xf32>
    tpu.vector_store %arg4[%c0_61, %c0_62, %c0_63, %c0_64], %174 {strides = array<i32>} : memref<1x1x1x24xf32, #tpu.memory_space<vmem>>, vector<1x1x1x24xf32>,
    return
  }
  func.func @transform_0(%arg0: i32, %arg1: i32) -> (i32, i32, i32, i32) {
    %c0_i32 = arith.constant 0 : i32
    %c0_i32_0 = arith.constant 0 : i32
    %c0_i32_1 = arith.constant 0 : i32
    return %arg0, %arg1, %c0_i32, %c0_i32_0 : i32, i32, i32, i32
  }
  func.func @transform_1(%arg0: i32, %arg1: i32) -> (i32, i32, i32, i32) {
    %c0_i32 = arith.constant 0 : i32
    %c0_i32_0 = arith.constant 0 : i32
    %c0_i32_1 = arith.constant 0 : i32
    return %arg0, %arg1, %c0_i32, %c0_i32_0 : i32, i32, i32, i32
  }
  func.func @transform_2(%arg0: i32, %arg1: i32) -> (i32, i32, i32, i32) {
    %c0_i32 = arith.constant 0 : i32
    %c0_i32_0 = arith.constant 0 : i32
    %c0_i32_1 = arith.constant 0 : i32
    return %arg0, %arg1, %c0_i32, %c0_i32_0 : i32, i32, i32, i32
  }
}

</mosaic_0001>

<llo_original>
// kernel: tpu_custom_call.1
$region0: #{tpu_custom_call.1}
  #allocation0 [shape = 'u32[]', space=smem, size = 0x4, offset = 0x4, fixed_abs, tag = 'smem constant byte address 0x4 - core index']
  #allocation1 [shape = 'u32[144,128]{1,0:T(1,128)}', space=vmem, size = 0x12000, scoped, tag = 'internal scratch']
  %s0 = inlined_call_operand.hbm [shape: f32[2,4,24,24], index: 0, kind: input, shape index: {}]
  %s1 = inlined_call_operand.hbm [shape: f32[2,4,24,24], index: 1, kind: input, shape index: {}]
  %s2 = inlined_call_operand.hbm [shape: f32[2,4,1,24], index: 2, kind: output, shape index: {}]
  %s3 = sld [smem:[#allocation0]]
  $region49: #{tpu_custom_call.1} parent=0
    _
  %s5 = ssub.s32 1, %s3
  %s6 = scalar_select 0, %s5, %s3
  $region1: #{tpu_custom_call.1} parent=0
    #allocation2 [shape = 'u8[24576]{0}', space=vmem, size = 0x6000, scoped, tag = 'input window, operand 0']
    #allocation3 [shape = 's32[2]{0}', space=sflag, size = 0x8, scoped, tag = 'scoped memory for tpu_custom_call.1']
    #allocation4 [shape = 's32[2]{0}', space=sflag, size = 0x8, scoped, tag = 'scoped memory for tpu_custom_call.1']
    #allocation5 [shape = 'u8[24576]{0}', space=vmem, size = 0x6000, scoped, tag = 'input window, operand 1']
    #allocation6 [shape = 's32[2]{0}', space=sflag, size = 0x8, scoped, tag = 'scoped memory for tpu_custom_call.1']
    #allocation7 [shape = 'u8[1024]{0}', space=vmem, size = 0x400, scoped, tag = 'output window, operand 0']
    %7 = vsyncpa [#allocation3], 0
    %s8 = scalar_lea.sflag [#allocation3], 1
    %9 = vsyncpa %s8, 0
    %10 = vsyncpa [#allocation6], 0
    %s11 = scalar_lea.sflag [#allocation6], 1
    %12 = vsyncpa %s11, 0
    %13 = vsyncpa [#allocation4], 0
    %s14 = scalar_lea.sflag [#allocation4], 1
    %15 = vsyncpa %s14, 0
    loop: start=0, step=1, limit=10
    $region2: #{tpu_custom_call.1} parent=1 // loop_pre_header
      _
    $region3: #{tpu_custom_call.1} parent=1 // loop_header
      %s17 = sphi 0, %s21
      %p18 = scmp.ge.s32.totalorder %s17, 10
      %s24 = sphi 0, %s36
      %s25 = sphi 0, %s32
      %s26 = sphi 0, %s24
      %s27 = sphi 0, %s25
      %s28 = sphi 0, %s26
      %s29 = sphi 0, %s27
      %s41 = sphi 0, %s43
      %s44 = sphi 0, %s41
      %s45 = sphi 0, %s44
      %s61 = sphi 0, %s45
      %s69 = sphi 0, %s71
      %s72 = sphi 0, %s69
      %s73 = sphi 0, %s72
      %s89 = sphi 0, %s73
      %s97 = sphi 0, %s99
      %s100 = sphi 0, %s97
      %s101 = sphi 0, %s100
      %s117 = sphi 0, %s101
    $region4: #{tpu_custom_call.1} parent=1 // loop_header_branch
      %20 = sbr.rel (%p18) target = $region8
    $region5: #{tpu_custom_call.1} parent=1 // loop_body
      %s22 = ssub.s32 %s17, 1
      %s23 = ssub.s32 %s17, 2
      %s30 = sadd.s32 1, %s25
      %p31 = scmp.ge.s32.totalorder %s30, 4
      %s32 = scalar_select %p31, 0, %s30
      %s33 = sadd.s32 1, %s24
      %s34 = scalar_select %p31, %s33, %s24
      %p35 = scmp.ge.s32.totalorder %s34, 2
      %s36 = scalar_select %p35, 0, %s34
      %s37 = ssub.s32 %s24, %s36
      %s38 = ssub.s32 %s25, %s32
      %s39 = sor.u32 %s37, %s38
      %p40 = scmp.eq.s32.totalorder %s39, 0
      %s42 = sadd.s32 %s41, 1
      %s43 = scalar_select %p40, %s41, %s42
      %p46 = pneg %p40
      %p47 = scmp.eq.s32.totalorder %s17, 7
      %p48 = por %p46, %p47
      %p49 = scmp.ne.s32.totalorder %s41, %s44
      %p50 = scmp.eq.s32.totalorder %s17, 0
      %p51 = por %p49, %p50
      %p52 = scmp.ne.s32.totalorder %s41, %s44
      %p53 = scmp.eq.s32.totalorder %s22, 7
      %p54 = por %p52, %p53
      %p55 = scmp.ne.s32.totalorder %s44, %s45
      %p56 = scmp.eq.s32.totalorder %s22, 0
      %p57 = por %p55, %p56
      %p58 = scmp.ne.s32.totalorder %s44, %s45
      %p59 = scmp.eq.s32.totalorder %s23, 7
      %p60 = por %p58, %p59
      %p62 = scmp.ne.s32.totalorder %s45, %s61
      %p63 = scmp.eq.s32.totalorder %s23, 0
      %p64 = por %p62, %p63
      %s65 = ssub.s32 %s24, %s36
      %s66 = ssub.s32 %s25, %s32
      %s67 = sor.u32 %s65, %s66
      %p68 = scmp.eq.s32.totalorder %s67, 0
      %s70 = sadd.s32 %s69, 1
      %s71 = scalar_select %p68, %s69, %s70
      %p74 = pneg %p68
      %p75 = scmp.eq.s32.totalorder %s17, 7
      %p76 = por %p74, %p75
      %p77 = scmp.ne.s32.totalorder %s69, %s72
      %p78 = scmp.eq.s32.totalorder %s17, 0
      %p79 = por %p77, %p78
      %p80 = scmp.ne.s32.totalorder %s69, %s72
      %p81 = scmp.eq.s32.totalorder %s22, 7
      %p82 = por %p80, %p81
      %p83 = scmp.ne.s32.totalorder %s72, %s73
      %p84 = scmp.eq.s32.totalorder %s22, 0
      %p85 = por %p83, %p84
      %p86 = scmp.ne.s32.totalorder %s72, %s73
      %p87 = scmp.eq.s32.totalorder %s23, 7
      %p88 = por %p86, %p87
      %p90 = scmp.ne.s32.totalorder %s73, %s89
      %p91 = scmp.eq.s32.totalorder %s23, 0
      %p92 = por %p90, %p91
      %s93 = ssub.s32 %s24, %s36
      %s94 = ssub.s32 %s25, %s32
      %s95 = sor.u32 %s93, %s94
      %p96 = scmp.eq.s32.totalorder %s95, 0
      %s98 = sadd.s32 %s97, 1
      %s99 = scalar_select %p96, %s97, %s98
      %p102 = pneg %p96
      %p103 = scmp.eq.s32.totalorder %s17, 7
      %p104 = por %p102, %p103
      %p105 = scmp.ne.s32.totalorder %s97, %s100
      %p106 = scmp.eq.s32.totalorder %s17, 0
      %p107 = por %p105, %p106
      %p108 = scmp.ne.s32.totalorder %s97, %s100
      %p109 = scmp.eq.s32.totalorder %s22, 7
      %p110 = por %p108, %p109
      %p111 = scmp.ne.s32.totalorder %s100, %s101
      %p112 = scmp.eq.s32.totalorder %s22, 0
      %p113 = por %p111, %p112
      %p114 = scmp.ne.s32.totalorder %s100, %s101
      %p115 = scmp.eq.s32.totalorder %s23, 7
      %p116 = por %p114, %p115
      %p118 = scmp.ne.s32.totalorder %s101, %s117
      %p119 = scmp.eq.s32.totalorder %s23, 0
      %p120 = por %p118, %p119
      %p121 = scmp.le.s32.totalorder 1, %s17
      %p122 = scmp.lt.s32.totalorder %s17, 9
      %p123 = pnand %p121, %p122
      %p124 = pneg %p123
      // Predicated region
      $region9: #{tpu_custom_call.1} parent=5 // pred_check
        _
      $region10: #{tpu_custom_call.1} parent=5 // pred_check_branch
        %126 = sbr.rel (%p123) target = $region12
      $region11: #{tpu_custom_call.1} parent=5 // pred_region
        %s127 = ssub.s32 %s17, 1
      $region12: #{tpu_custom_call.1} parent=5 // pred_fallthru
        _
      %p128 = scmp.lt.s32.totalorder %s17, 8
      // Predicated region
      $region13: #{tpu_custom_call.1} parent=5 // pred_check
        %p129 = pneg %p128
      $region14: #{tpu_custom_call.1} parent=5 // pred_check_branch
        %131 = sbr.rel (%p129) target = $region16
      $region15: #{tpu_custom_call.1} parent=5 // pred_region
        // Predicated region
        $region17: #{tpu_custom_call.1} parent=15 // pred_check
          %p132 = pneg %p51
        $region18: #{tpu_custom_call.1} parent=15 // pred_check_branch
          %134 = sbr.rel (%p132) target = $region20
        $region19: #{tpu_custom_call.1} parent=15 // pred_region
          %s135 = sand.u32 %s41, 1
          %s136 = scalar_lea.sflag [#allocation3], %s135
          %s137 = sand.u32 %s41, 1
          %s138 = smul.addr %s137, 24
          %s139 = scalar_lea.vmem [#allocation2], %s138
          %s141 = ssub.s32 384, 384
          %142 = vsyncadd %s136, %s141
          %s143 = smul.addr %s25, 3
          %s144 = smul.addr %s24, 12
          %s145 = sadd.s32 %s143, %s144
          %s146 = smul.addr %s145, 128
          %s147 = scalar_lea.hbm %s0, %s146
          %s148 = sshll.u32 %s139, 4
          %s149 = int_to_ptr.vmem [resolvable:$true] %s148
          %154 = dma.hbm_to_vmem [thread:$0]  %s147, 384, %s149, %s136, 128, 128, 8
        $region20: #{tpu_custom_call.1} parent=15 // pred_fallthru
          _
        // Predicated region
        $region21: #{tpu_custom_call.1} parent=15 // pred_check
          %p155 = pneg %p79
        $region22: #{tpu_custom_call.1} parent=15 // pred_check_branch
          %157 = sbr.rel (%p155) target = $region24
        $region23: #{tpu_custom_call.1} parent=15 // pred_region
          %s158 = sand.u32 %s69, 1
          %s159 = scalar_lea.sflag [#allocation6], %s158
          %s160 = sand.u32 %s69, 1
          %s161 = smul.addr %s160, 24
          %s162 = scalar_lea.vmem [#allocation5], %s161
          %s164 = ssub.s32 384, 384
          %165 = vsyncadd %s159, %s164
          %s166 = smul.addr %s25, 3
          %s167 = smul.addr %s24, 12
          %s168 = sadd.s32 %s166, %s167
          %s169 = smul.addr %s168, 128
          %s170 = scalar_lea.hbm %s1, %s169
          %s171 = sshll.u32 %s162, 4
          %s172 = int_to_ptr.vmem [resolvable:$true] %s171
          %177 = dma.hbm_to_vmem [thread:$0]  %s170, 384, %s172, %s159, 128, 128, 8
        $region24: #{tpu_custom_call.1} parent=15 // pred_fallthru
          _
      $region16: #{tpu_custom_call.1} parent=5 // pred_fallthru
        _
      %p178 = scmp.le.s32.totalorder 1, %s17
      %p179 = scmp.lt.s32.totalorder %s17, 9
      %p180 = pnand %p178, %p179
      %p181 = pneg %p180
      // Predicated region
      $region25: #{tpu_custom_call.1} parent=5 // pred_check
        _
      $region26: #{tpu_custom_call.1} parent=5 // pred_check_branch
        %183 = sbr.rel (%p180) target = $region28
      $region27: #{tpu_custom_call.1} parent=5 // pred_region
        %s184 = ssub.s32 %s17, 1
        %s185 = sand.u32 %s44, 1
        %s186 = scalar_lea.sflag [#allocation3], %s185
        %s187 = sand.u32 %s44, 1
        %s188 = smul.addr %s187, 24
        %s189 = scalar_lea.vmem [#allocation2], %s188
        // Predicated region
        $region29: #{tpu_custom_call.1} parent=27 // pred_check
          %p190 = pneg %p57
        $region30: #{tpu_custom_call.1} parent=27 // pred_check_branch
          %192 = sbr.rel (%p190) target = $region32
        $region31: #{tpu_custom_call.1} parent=27 // pred_region
          %193 = dma.done %s186, 384
        $region32: #{tpu_custom_call.1} parent=27 // pred_fallthru
          _
        %s194 = sand.u32 %s72, 1
        %s195 = scalar_lea.sflag [#allocation6], %s194
        %s196 = sand.u32 %s72, 1
        %s197 = smul.addr %s196, 24
        %s198 = scalar_lea.vmem [#allocation5], %s197
        // Predicated region
        $region33: #{tpu_custom_call.1} parent=27 // pred_check
          %p199 = pneg %p85
        $region34: #{tpu_custom_call.1} parent=27 // pred_check_branch
          %201 = sbr.rel (%p199) target = $region36
        $region35: #{tpu_custom_call.1} parent=27 // pred_region
          %202 = dma.done %s195, 384
        $region36: #{tpu_custom_call.1} parent=27 // pred_fallthru
          _
        %s203 = sand.u32 %s44, 1
        %s204 = scalar_lea.sflag [#allocation3], %s203
        %s205 = sand.u32 %s44, 1
        %s206 = smul.addr %s205, 24
        %s207 = scalar_lea.vmem [#allocation2], %s206
        %p208 = pneg %p57
        %p209 = pneg %p54
        %s210 = sand.u32 %s72, 1
        %s211 = scalar_lea.sflag [#allocation6], %s210
        %s212 = sand.u32 %s72, 1
        %s213 = smul.addr %s212, 24
        %s214 = scalar_lea.vmem [#allocation5], %s213
        %p215 = pneg %p85
        %p216 = pneg %p82
        %p217 = pneg %p113
        %p218 = pneg %p110
        %s219 = sand.u32 %s100, 1
        %s220 = scalar_lea.sflag [#allocation4], %s219
        %s221 = sand.u32 %s100, 1
        %s222 = scalar_lea.vmem [#allocation7], %s221
        %v223 = vld [vmem:[%s189] sm:$0xff]
        %v224 = vld [vmem:[%s189 + $0x8] sm:$0xff]
        %v225 = vld [vmem:[%s189 + $0x10] sm:$0xff]
        %v226 = vld [vmem:[%s198] sm:$0xff]
        %v227 = vld [vmem:[%s198 + $0x8] sm:$0xff]
        %v228 = vld [vmem:[%s198 + $0x10] sm:$0xff]
        %v229 = vlaneseq
        %v230 = vand.u32 %v229, 127
        %v231 = vlaneseq
        %v232 = vshrl.u32 %v231, 7
        %v233 = vadd.s32 %v232, 8
        %v234 = vadd.s32 %v232, 16
        %v235 = vadd.s32 %v230, 4294967295
        %vm236 = vcmp.ge.s32.totalorder %v235, 0
        %vm237 = vcmp.lt.s32.totalorder %v235, 24
        %vm238 = vmand %vm236, %vm237
        %v239 = vadd.s32 %v230, 1
        %vm240 = vcmp.ge.s32.totalorder %v239, 0
        %vm241 = vcmp.lt.s32.totalorder %v239, 24
        %vm242 = vmand %vm240, %vm241
        %v243 = vadd.s32 %v230, 2
        %vm244 = vcmp.ge.s32.totalorder %v243, 0
        %vm245 = vcmp.lt.s32.totalorder %v243, 24
        %vm246 = vmand %vm244, %vm245
        %v247 = vadd.s32 %v232, 4294967295
        %v248 = vadd.s32 %v233, 4294967295
        %v249 = vadd.s32 %v234, 4294967295
        %vm250 = vcmp.ge.s32.totalorder %v247, 0
        %vm251 = vcmp.ge.s32.totalorder %v248, 0
        %vm252 = vcmp.ge.s32.totalorder %v249, 0
        %vm253 = vcmp.lt.s32.totalorder %v247, 24
        %vm254 = vcmp.lt.s32.totalorder %v248, 24
        %vm255 = vcmp.lt.s32.totalorder %v249, 24
        %vm256 = vmand %vm250, %vm253
        %vm257 = vmand %vm251, %vm254
        %vm258 = vmand %vm252, %vm255
        %v259 = vadd.s32 %v232, 1
        %v260 = vadd.s32 %v233, 1
        %v261 = vadd.s32 %v234, 1
        %vm262 = vcmp.ge.s32.totalorder %v259, 0
        %vm263 = vcmp.ge.s32.totalorder %v260, 0
        %vm264 = vcmp.ge.s32.totalorder %v261, 0
        %vm265 = vcmp.lt.s32.totalorder %v259, 24
        %vm266 = vcmp.lt.s32.totalorder %v260, 24
        %vm267 = vcmp.lt.s32.totalorder %v261, 24
        %vm268 = vmand %vm262, %vm265
        %vm269 = vmand %vm263, %vm266
        %vm270 = vmand %vm264, %vm267
        %v271 = vadd.s32 %v232, 2
        %v272 = vadd.s32 %v233, 2
        %v273 = vadd.s32 %v234, 2
        %vm274 = vcmp.ge.s32.totalorder %v271, 0
        %vm275 = vcmp.ge.s32.totalorder %v272, 0
        %vm276 = vcmp.ge.s32.totalorder %v273, 0
        %vm277 = vcmp.lt.s32.totalorder %v271, 24
        %vm278 = vcmp.lt.s32.totalorder %v272, 24
        %vm279 = vcmp.lt.s32.totalorder %v273, 24
        %vm280 = vmand %vm274, %vm277
        %vm281 = vmand %vm275, %vm278
        %vm282 = vmand %vm276, %vm279
        %vm283 = vcmask 1047744
        %284 = vrot.lane.b32.xlu0 %v223, 24
        %v285 = vpop.permute.xlu0 %284
        %v286 = vsel %vm283, %v285, %v223
        %287 = vrot.lane.b32.xlu0 %v224, 24
        %v288 = vpop.permute.xlu0 %287
        %v289 = vsel %vm283, %v288, %v224
        %290 = vrot.lane.b32.xlu0 %v225, 24
        %v291 = vpop.permute.xlu0 %290
        %v292 = vsel %vm283, %v291, %v225
        %293 = vrot.lane.b32.xlu0 %v286, 24
        %v294 = vpop.permute.xlu0 %293
        %295 = vrot.lane.b32.xlu0 %v289, 24
        %v296 = vpop.permute.xlu0 %295
        %297 = vrot.lane.b32.xlu0 %v292, 24
        %v298 = vpop.permute.xlu0 %297
        %v299 = vsel %vm283, %v294, %v223
        %v300 = vsel %vm283, %v296, %v224
        %v301 = vsel %vm283, %v298, %v225
        %305 = vrot.lane.b32.xlu0 %v299, 105
        %v306 = vpop.permute.xlu0 %305
        %307 = vrot.lane.b32.xlu0 %v300, 105
        %v308 = vpop.permute.xlu0 %307
        %309 = vrot.lane.b32.xlu0 %v301, 105
        %v310 = vpop.permute.xlu0 %309
        %v314 = vsel %vm238, %v306, 0.0
        %v315 = vsel %vm238, %v308, 0.0
        %v316 = vsel %vm238, %v310, 0.0
        %v317 = vadd.f32 %v223, %v314
        %v318 = vadd.f32 %v224, %v315
        %v319 = vadd.f32 %v225, %v316
        %320 = vrot.lane.b32.xlu0 %v299, 127
        %v321 = vpop.permute.xlu0 %320
        %322 = vrot.lane.b32.xlu0 %v300, 127
        %v323 = vpop.permute.xlu0 %322
        %324 = vrot.lane.b32.xlu0 %v301, 127
        %v325 = vpop.permute.xlu0 %324
        %v329 = vsel %vm242, %v321, 0.0
        %v330 = vsel %vm242, %v323, 0.0
        %v331 = vsel %vm242, %v325, 0.0
        %v332 = vadd.f32 %v317, %v329
        %v333 = vadd.f32 %v318, %v330
        %v334 = vadd.f32 %v319, %v331
        %335 = vrot.lane.b32.xlu0 %v299, 126
        %v336 = vpop.permute.xlu0 %335
        %337 = vrot.lane.b32.xlu0 %v300, 126
        %v338 = vpop.permute.xlu0 %337
        %339 = vrot.lane.b32.xlu0 %v301, 126
        %v340 = vpop.permute.xlu0 %339
        %v344 = vsel %vm246, %v336, 0.0
        %v345 = vsel %vm246, %v338, 0.0
        %v346 = vsel %vm246, %v340, 0.0
        %v347 = vadd.f32 %v332, %v344
        %v348 = vadd.f32 %v333, %v345
        %v349 = vadd.f32 %v334, %v346
        %v350 = vrot.slane %v347, 7
        %v351 = vrot.slane %v348, 7
        %v352 = vrot.slane %v349, 7
        %vm353 = vcmp.lt.s32.totalorder %v232, 1
        %v354 = vsel %vm353, %v351, %v352
        %v355 = vsel %vm353, %v350, %v351
        %v356 = vsel %vm353, %v352, %v350
        %v357 = vsel %vm256, %v356, 0.0
        %v358 = vsel %vm257, %v355, 0.0
        %v359 = vsel %vm258, %v354, 0.0
        %v360 = vadd.f32 %v347, %v357
        %v361 = vadd.f32 %v348, %v358
        %v362 = vadd.f32 %v349, %v359
        %v363 = vrot.slane %v347, 1
        %v364 = vrot.slane %v348, 1
        %v365 = vrot.slane %v349, 1
        %vm366 = vcmp.lt.s32.totalorder %v232, 7
        %v367 = vsel %vm366, %v364, %v365
        %v368 = vsel %vm366, %v363, %v364
        %v369 = vsel %vm366, %v365, %v363
        %v370 = vsel %vm268, %v368, 0.0
        %v371 = vsel %vm269, %v367, 0.0
        %v372 = vsel %vm270, %v369, 0.0
        %v373 = vadd.f32 %v360, %v370
        %v374 = vadd.f32 %v361, %v371
        %v375 = vadd.f32 %v362, %v372
        %v376 = vrot.slane %v347, 2
        %v377 = vrot.slane %v348, 2
        %v378 = vrot.slane %v349, 2
        %vm379 = vcmp.lt.s32.totalorder %v232, 6
        %v380 = vsel %vm379, %v377, %v378
        %v381 = vsel %vm379, %v376, %v377
        %v382 = vsel %vm379, %v378, %v376
        %v383 = vsel %vm280, %v381, 0.0
        %v384 = vsel %vm281, %v380, 0.0
        %v385 = vsel %vm282, %v382, 0.0
        %v386 = vadd.f32 %v373, %v383
        %v387 = vadd.f32 %v374, %v384
        %v388 = vadd.f32 %v375, %v385
        %v389 = vmul.f32 %v386, 0.0625
        %v390 = vmul.f32 %v387, 0.0625
        %v391 = vmul.f32 %v388, 0.0625
        %392 = vrot.lane.b32.xlu0 %v226, 24
        %v393 = vpop.permute.xlu0 %392
        %v394 = vsel %vm283, %v393, %v226
        %395 = vrot.lane.b32.xlu0 %v227, 24
        %v396 = vpop.permute.xlu0 %395
        %v397 = vsel %vm283, %v396, %v227
        %398 = vrot.lane.b32.xlu0 %v228, 24
        %v399 = vpop.permute.xlu0 %398
        %v400 = vsel %vm283, %v399, %v228
        %401 = vrot.lane.b32.xlu0 %v394, 24
        %v402 = vpop.permute.xlu0 %401
        %403 = vrot.lane.b32.xlu0 %v397, 24
        %v404 = vpop.permute.xlu0 %403
        %405 = vrot.lane.b32.xlu0 %v400, 24
        %v406 = vpop.permute.xlu0 %405
        %v407 = vsel %vm283, %v402, %v226
        %v408 = vsel %vm283, %v404, %v227
        %v409 = vsel %vm283, %v406, %v228
        %413 = vrot.lane.b32.xlu0 %v407, 105
        %v414 = vpop.permute.xlu0 %413
        %415 = vrot.lane.b32.xlu0 %v408, 105
        %v416 = vpop.permute.xlu0 %415
        %417 = vrot.lane.b32.xlu0 %v409, 105
        %v418 = vpop.permute.xlu0 %417
        %v422 = vsel %vm238, %v414, 0.0
        %v423 = vsel %vm238, %v416, 0.0
        %v424 = vsel %vm238, %v418, 0.0
        %v425 = vadd.f32 %v226, %v422
        %v426 = vadd.f32 %v227, %v423
        %v427 = vadd.f32 %v228, %v424
        %428 = vrot.lane.b32.xlu0 %v407, 127
        %v429 = vpop.permute.xlu0 %428
        %430 = vrot.lane.b32.xlu0 %v408, 127
        %v431 = vpop.permute.xlu0 %430
        %432 = vrot.lane.b32.xlu0 %v409, 127
        %v433 = vpop.permute.xlu0 %432
        %v437 = vsel %vm242, %v429, 0.0
        %v438 = vsel %vm242, %v431, 0.0
        %v439 = vsel %vm242, %v433, 0.0
        %v440 = vadd.f32 %v425, %v437
        %v441 = vadd.f32 %v426, %v438
        %v442 = vadd.f32 %v427, %v439
        %443 = vrot.lane.b32.xlu0 %v407, 126
        %v444 = vpop.permute.xlu0 %443
        %445 = vrot.lane.b32.xlu0 %v408, 126
        %v446 = vpop.permute.xlu0 %445
        %447 = vrot.lane.b32.xlu0 %v409, 126
        %v448 = vpop.permute.xlu0 %447
        %v452 = vsel %vm246, %v444, 0.0
        %v453 = vsel %vm246, %v446, 0.0
        %v454 = vsel %vm246, %v448, 0.0
        %v455 = vadd.f32 %v440, %v452
        %v456 = vadd.f32 %v441, %v453
        %v457 = vadd.f32 %v442, %v454
        %v458 = vrot.slane %v455, 7
        %v459 = vrot.slane %v456, 7
        %v460 = vrot.slane %v457, 7
        %v461 = vsel %vm353, %v459, %v460
        %v462 = vsel %vm353, %v458, %v459
        %v463 = vsel %vm353, %v460, %v458
        %v464 = vsel %vm256, %v463, 0.0
        %v465 = vsel %vm257, %v462, 0.0
        %v466 = vsel %vm258, %v461, 0.0
        %v467 = vadd.f32 %v455, %v464
        %v468 = vadd.f32 %v456, %v465
        %v469 = vadd.f32 %v457, %v466
        %v470 = vrot.slane %v455, 1
        %v471 = vrot.slane %v456, 1
        %v472 = vrot.slane %v457, 1
        %v473 = vsel %vm366, %v471, %v472
        %v474 = vsel %vm366, %v470, %v471
        %v475 = vsel %vm366, %v472, %v470
        %v476 = vsel %vm268, %v474, 0.0
        %v477 = vsel %vm269, %v473, 0.0
        %v478 = vsel %vm270, %v475, 0.0
        %v479 = vadd.f32 %v467, %v476
        %v480 = vadd.f32 %v468, %v477
        %v481 = vadd.f32 %v469, %v478
        %v482 = vrot.slane %v455, 2
        %v483 = vrot.slane %v456, 2
        %v484 = vrot.slane %v457, 2
        %v485 = vsel %vm379, %v483, %v484
        %v486 = vsel %vm379, %v482, %v483
        %v487 = vsel %vm379, %v484, %v482
        %v488 = vsel %vm280, %v486, 0.0
        %v489 = vsel %vm281, %v485, 0.0
        %v490 = vsel %vm282, %v487, 0.0
        %v491 = vadd.f32 %v479, %v488
        %v492 = vadd.f32 %v480, %v489
        %v493 = vadd.f32 %v481, %v490
        %v494 = vmul.f32 %v491, 0.0625
        %v495 = vmul.f32 %v492, 0.0625
        %v496 = vmul.f32 %v493, 0.0625
        %v497 = vsub.f32 %v223, %v389
        %v498 = vsub.f32 %v224, %v390
        %v499 = vsub.f32 %v225, %v391
        %v500 = vsub.f32 %v226, %v494
        %v501 = vsub.f32 %v227, %v495
        %v502 = vsub.f32 %v228, %v496
        %v503 = vmul.f32 %v497, %v497
        %v504 = vmul.f32 %v498, %v498
        %v505 = vmul.f32 %v499, %v499
        %506 = vrot.lane.b32.xlu0 %v503, 24
        %v507 = vpop.permute.xlu0 %506
        %v508 = vsel %vm283, %v507, %v503
        %509 = vrot.lane.b32.xlu0 %v504, 24
        %v510 = vpop.permute.xlu0 %509
        %v511 = vsel %vm283, %v510, %v504
        %512 = vrot.lane.b32.xlu0 %v505, 24
        %v513 = vpop.permute.xlu0 %512
        %v514 = vsel %vm283, %v513, %v505
        %515 = vrot.lane.b32.xlu0 %v508, 24
        %v516 = vpop.permute.xlu0 %515
        %517 = vrot.lane.b32.xlu0 %v511, 24
        %v518 = vpop.permute.xlu0 %517
        %519 = vrot.lane.b32.xlu0 %v514, 24
        %v520 = vpop.permute.xlu0 %519
        %v521 = vsel %vm283, %v516, %v503
        %v522 = vsel %vm283, %v518, %v504
        %v523 = vsel %vm283, %v520, %v505
        %527 = vrot.lane.b32.xlu0 %v521, 105
        %v528 = vpop.permute.xlu0 %527
        %529 = vrot.lane.b32.xlu0 %v522, 105
        %v530 = vpop.permute.xlu0 %529
        %531 = vrot.lane.b32.xlu0 %v523, 105
        %v532 = vpop.permute.xlu0 %531
        %v536 = vsel %vm238, %v528, 0.0
        %v537 = vsel %vm238, %v530, 0.0
        %v538 = vsel %vm238, %v532, 0.0
        %v539 = vadd.f32 %v503, %v536
        %v540 = vadd.f32 %v504, %v537
        %v541 = vadd.f32 %v505, %v538
        %542 = vrot.lane.b32.xlu0 %v521, 127
        %v543 = vpop.permute.xlu0 %542
        %544 = vrot.lane.b32.xlu0 %v522, 127
        %v545 = vpop.permute.xlu0 %544
        %546 = vrot.lane.b32.xlu0 %v523, 127
        %v547 = vpop.permute.xlu0 %546
        %v551 = vsel %vm242, %v543, 0.0
        %v552 = vsel %vm242, %v545, 0.0
        %v553 = vsel %vm242, %v547, 0.0
        %v554 = vadd.f32 %v539, %v551
        %v555 = vadd.f32 %v540, %v552
        %v556 = vadd.f32 %v541, %v553
        %557 = vrot.lane.b32.xlu0 %v521, 126
        %v558 = vpop.permute.xlu0 %557
        %559 = vrot.lane.b32.xlu0 %v522, 126
        %v560 = vpop.permute.xlu0 %559
        %561 = vrot.lane.b32.xlu0 %v523, 126
        %v562 = vpop.permute.xlu0 %561
        %v566 = vsel %vm246, %v558, 0.0
        %v567 = vsel %vm246, %v560, 0.0
        %v568 = vsel %vm246, %v562, 0.0
        %v569 = vadd.f32 %v554, %v566
        %v570 = vadd.f32 %v555, %v567
        %v571 = vadd.f32 %v556, %v568
        %v572 = vrot.slane %v569, 7
        %v573 = vrot.slane %v570, 7
        %v574 = vrot.slane %v571, 7
        %v575 = vsel %vm353, %v573, %v574
        %v576 = vsel %vm353, %v572, %v573
        %v577 = vsel %vm353, %v574, %v572
        %v578 = vsel %vm256, %v577, 0.0
        %v579 = vsel %vm257, %v576, 0.0
        %v580 = vsel %vm258, %v575, 0.0
        %v581 = vadd.f32 %v569, %v578
        %v582 = vadd.f32 %v570, %v579
        %v583 = vadd.f32 %v571, %v580
        %v584 = vrot.slane %v569, 1
        %v585 = vrot.slane %v570, 1
        %v586 = vrot.slane %v571, 1
        %v587 = vsel %vm366, %v585, %v586
        %v588 = vsel %vm366, %v584, %v585
        %v589 = vsel %vm366, %v586, %v584
        %v590 = vsel %vm268, %v588, 0.0
        %v591 = vsel %vm269, %v587, 0.0
        %v592 = vsel %vm270, %v589, 0.0
        %v593 = vadd.f32 %v581, %v590
        %v594 = vadd.f32 %v582, %v591
        %v595 = vadd.f32 %v583, %v592
        %v596 = vrot.slane %v569, 2
        %v597 = vrot.slane %v570, 2
        %v598 = vrot.slane %v571, 2
        %v599 = vsel %vm379, %v597, %v598
        %v600 = vsel %vm379, %v596, %v597
        %v601 = vsel %vm379, %v598, %v596
        %v602 = vsel %vm280, %v600, 0.0
        %v603 = vsel %vm281, %v599, 0.0
        %v604 = vsel %vm282, %v601, 0.0
        %v605 = vadd.f32 %v593, %v602
        %v606 = vadd.f32 %v594, %v603
        %v607 = vadd.f32 %v595, %v604
        %v608 = vmul.f32 %v500, %v500
        %v609 = vmul.f32 %v501, %v501
        %v610 = vmul.f32 %v502, %v502
        %611 = vrot.lane.b32.xlu0 %v608, 24
        %v612 = vpop.permute.xlu0 %611
        %v613 = vsel %vm283, %v612, %v608
        %614 = vrot.lane.b32.xlu0 %v609, 24
        %v615 = vpop.permute.xlu0 %614
        %v616 = vsel %vm283, %v615, %v609
        %617 = vrot.lane.b32.xlu0 %v610, 24
        %v618 = vpop.permute.xlu0 %617
        %v619 = vsel %vm283, %v618, %v610
        %620 = vrot.lane.b32.xlu0 %v613, 24
        %v621 = vpop.permute.xlu0 %620
        %622 = vrot.lane.b32.xlu0 %v616, 24
        %v623 = vpop.permute.xlu0 %622
        %624 = vrot.lane.b32.xlu0 %v619, 24
        %v625 = vpop.permute.xlu0 %624
        %v626 = vsel %vm283, %v621, %v608
        %v627 = vsel %vm283, %v623, %v609
        %v628 = vsel %vm283, %v625, %v610
        %632 = vrot.lane.b32.xlu0 %v626, 105
        %v633 = vpop.permute.xlu0 %632
        %634 = vrot.lane.b32.xlu0 %v627, 105
        %v635 = vpop.permute.xlu0 %634
        %636 = vrot.lane.b32.xlu0 %v628, 105
        %v637 = vpop.permute.xlu0 %636
        %v641 = vsel %vm238, %v633, 0.0
        %v642 = vsel %vm238, %v635, 0.0
        %v643 = vsel %vm238, %v637, 0.0
        %v644 = vadd.f32 %v608, %v641
        %v645 = vadd.f32 %v609, %v642
        %v646 = vadd.f32 %v610, %v643
        %647 = vrot.lane.b32.xlu0 %v626, 127
        %v648 = vpop.permute.xlu0 %647
        %649 = vrot.lane.b32.xlu0 %v627, 127
        %v650 = vpop.permute.xlu0 %649
        %651 = vrot.lane.b32.xlu0 %v628, 127
        %v652 = vpop.permute.xlu0 %651
        %v656 = vsel %vm242, %v648, 0.0
        %v657 = vsel %vm242, %v650, 0.0
        %v658 = vsel %vm242, %v652, 0.0
        %v659 = vadd.f32 %v644, %v656
        %v660 = vadd.f32 %v645, %v657
        %v661 = vadd.f32 %v646, %v658
        %662 = vrot.lane.b32.xlu0 %v626, 126
        %v663 = vpop.permute.xlu0 %662
        %664 = vrot.lane.b32.xlu0 %v627, 126
        %v665 = vpop.permute.xlu0 %664
        %666 = vrot.lane.b32.xlu0 %v628, 126
        %v667 = vpop.permute.xlu0 %666
        %v671 = vsel %vm246, %v663, 0.0
        %v672 = vsel %vm246, %v665, 0.0
        %v673 = vsel %vm246, %v667, 0.0
        %v674 = vadd.f32 %v659, %v671
        %v675 = vadd.f32 %v660, %v672
        %v676 = vadd.f32 %v661, %v673
        %v677 = vrot.slane %v674, 7
        %v678 = vrot.slane %v675, 7
        %v679 = vrot.slane %v676, 7
        %v680 = vsel %vm353, %v678, %v679
        %v681 = vsel %vm353, %v677, %v678
        %v682 = vsel %vm353, %v679, %v677
        %v683 = vsel %vm256, %v682, 0.0
        %v684 = vsel %vm257, %v681, 0.0
        %v685 = vsel %vm258, %v680, 0.0
        %v686 = vadd.f32 %v674, %v683
        %v687 = vadd.f32 %v675, %v684
        %v688 = vadd.f32 %v676, %v685
        %v689 = vrot.slane %v674, 1
        %v690 = vrot.slane %v675, 1
        %v691 = vrot.slane %v676, 1
        %v692 = vsel %vm366, %v690, %v691
        %v693 = vsel %vm366, %v689, %v690
        %v694 = vsel %vm366, %v691, %v689
        %v695 = vsel %vm268, %v693, 0.0
        %v696 = vsel %vm269, %v692, 0.0
        %v697 = vsel %vm270, %v694, 0.0
        %v698 = vadd.f32 %v686, %v695
        %v699 = vadd.f32 %v687, %v696
        %v700 = vadd.f32 %v688, %v697
        %v701 = vrot.slane %v674, 2
        %v702 = vrot.slane %v675, 2
        %v703 = vrot.slane %v676, 2
        %v704 = vsel %vm379, %v702, %v703
        %v705 = vsel %vm379, %v701, %v702
        %v706 = vsel %vm379, %v703, %v701
        %v707 = vsel %vm280, %v705, 0.0
        %v708 = vsel %vm281, %v704, 0.0
        %v709 = vsel %vm282, %v706, 0.0
        %v710 = vadd.f32 %v698, %v707
        %v711 = vadd.f32 %v699, %v708
        %v712 = vadd.f32 %v700, %v709
        %v713 = vmul.f32 %v497, %v500
        %v714 = vmul.f32 %v498, %v501
        %v715 = vmul.f32 %v499, %v502
        %716 = vrot.lane.b32.xlu0 %v713, 24
        %v717 = vpop.permute.xlu0 %716
        %v718 = vsel %vm283, %v717, %v713
        %719 = vrot.lane.b32.xlu0 %v714, 24
        %v720 = vpop.permute.xlu0 %719
        %v721 = vsel %vm283, %v720, %v714
        %722 = vrot.lane.b32.xlu0 %v715, 24
        %v723 = vpop.permute.xlu0 %722
        %v724 = vsel %vm283, %v723, %v715
        %725 = vrot.lane.b32.xlu0 %v718, 24
        %v726 = vpop.permute.xlu0 %725
        %727 = vrot.lane.b32.xlu0 %v721, 24
        %v728 = vpop.permute.xlu0 %727
        %729 = vrot.lane.b32.xlu0 %v724, 24
        %v730 = vpop.permute.xlu0 %729
        %v731 = vsel %vm283, %v726, %v713
        %v732 = vsel %vm283, %v728, %v714
        %v733 = vsel %vm283, %v730, %v715
        %737 = vrot.lane.b32.xlu0 %v731, 105
        %v738 = vpop.permute.xlu0 %737
        %739 = vrot.lane.b32.xlu0 %v732, 105
        %v740 = vpop.permute.xlu0 %739
        %741 = vrot.lane.b32.xlu0 %v733, 105
        %v742 = vpop.permute.xlu0 %741
        %v746 = vsel %vm238, %v738, 0.0
        %v747 = vsel %vm238, %v740, 0.0
        %v748 = vsel %vm238, %v742, 0.0
        %v749 = vadd.f32 %v713, %v746
        %v750 = vadd.f32 %v714, %v747
        %v751 = vadd.f32 %v715, %v748
        %752 = vrot.lane.b32.xlu0 %v731, 127
        %v753 = vpop.permute.xlu0 %752
        %754 = vrot.lane.b32.xlu0 %v732, 127
        %v755 = vpop.permute.xlu0 %754
        %756 = vrot.lane.b32.xlu0 %v733, 127
        %v757 = vpop.permute.xlu0 %756
        %v761 = vsel %vm242, %v753, 0.0
        %v762 = vsel %vm242, %v755, 0.0
        %v763 = vsel %vm242, %v757, 0.0
        %v764 = vadd.f32 %v749, %v761
        %v765 = vadd.f32 %v750, %v762
        %v766 = vadd.f32 %v751, %v763
        %767 = vrot.lane.b32.xlu0 %v731, 126
        %v768 = vpop.permute.xlu0 %767
        %769 = vrot.lane.b32.xlu0 %v732, 126
        %v770 = vpop.permute.xlu0 %769
        %771 = vrot.lane.b32.xlu0 %v733, 126
        %v772 = vpop.permute.xlu0 %771
        %v776 = vsel %vm246, %v768, 0.0
        %v777 = vsel %vm246, %v770, 0.0
        %v778 = vsel %vm246, %v772, 0.0
        %v779 = vadd.f32 %v764, %v776
        %v780 = vadd.f32 %v765, %v777
        %v781 = vadd.f32 %v766, %v778
        %v782 = vrot.slane %v779, 7
        %v783 = vrot.slane %v780, 7
        %v784 = vrot.slane %v781, 7
        %v785 = vsel %vm353, %v783, %v784
        %v786 = vsel %vm353, %v782, %v783
        %v787 = vsel %vm353, %v784, %v782
        %v788 = vsel %vm256, %v787, 0.0
        %v789 = vsel %vm257, %v786, 0.0
        %v790 = vsel %vm258, %v785, 0.0
        %v791 = vadd.f32 %v779, %v788
        %v792 = vadd.f32 %v780, %v789
        %v793 = vadd.f32 %v781, %v790
        %v794 = vrot.slane %v779, 1
        %v795 = vrot.slane %v780, 1
        %v796 = vrot.slane %v781, 1
        %v797 = vsel %vm366, %v795, %v796
        %v798 = vsel %vm366, %v794, %v795
        %v799 = vsel %vm366, %v796, %v794
        %v800 = vsel %vm268, %v798, 0.0
        %v801 = vsel %vm269, %v797, 0.0
        %v802 = vsel %vm270, %v799, 0.0
        %v803 = vadd.f32 %v791, %v800
        %v804 = vadd.f32 %v792, %v801
        %v805 = vadd.f32 %v793, %v802
        %v806 = vrot.slane %v779, 2
        %v807 = vrot.slane %v780, 2
        %v808 = vrot.slane %v781, 2
        %v809 = vsel %vm379, %v807, %v808
        %v810 = vsel %vm379, %v806, %v807
        %v811 = vsel %vm379, %v808, %v806
        %v812 = vsel %vm280, %v810, 0.0
        %v813 = vsel %vm281, %v809, 0.0
        %v814 = vsel %vm282, %v811, 0.0
        %v815 = vadd.f32 %v803, %v812
        %v816 = vadd.f32 %v804, %v813
        %v817 = vadd.f32 %v805, %v814
        %v818 = vmax.f32 %v605, 1e-20
        %v819 = vmax.f32 %v606, 1e-20
        %v820 = vmax.f32 %v607, 1e-20
        %v821 = vmax.f32 %v710, 1e-20
        %v822 = vmax.f32 %v711, 1e-20
        %v823 = vmax.f32 %v712, 1e-20
        %v824 = vmul.f32 %v818, %v821
        %v825 = vmul.f32 %v819, %v822
        %v826 = vmul.f32 %v820, %v823
        %v827 = vrsqrt.pop %v824
        %v828 = vrsqrt.pop %v825
        %v829 = vrsqrt.pop %v826
        %v830 = vmul.f32 %v815, %v827
        %v831 = vmul.f32 %v816, %v828
        %v832 = vmul.f32 %v817, %v829
        %v833 = vmax.f32 %v830, -1.0
        %v834 = vmax.f32 %v831, -1.0
        %v835 = vmax.f32 %v832, -1.0
        %v836 = vand.u32 2147483647, %v833
        %v837 = vand.u32 2147483647, %v834
        %v838 = vand.u32 2147483647, %v835
        %v839 = vsub.f32 1.0, %v836
        %v840 = vsub.f32 1.0, %v837
        %v841 = vsub.f32 1.0, %v838
        %vm842 = vcmask 195584
        %v843 = vsel %vm842, %v839, 0.0
        %v844 = vsel %vm842, %v840, 0.0
        %v845 = vadd.f32 %v843, %v844
        %v846 = vsel %vm842, %v841, 0.0
        %v847 = vadd.f32 %v845, %v846
        %v848 = vrot.slane %v847, 4
        %v849 = vadd.f32 %v847, %v848
        %v850 = vrot.slane %v849, 2
        %v851 = vadd.f32 %v849, %v850
        %v852 = vrot.slane %v851, 1
        %v853 = vadd.f32 %v851, %v852
        %vm854 = vcmask 188416
        %855 = vst.msk [vmem:[%s222] sm:$0x1] %vm854, %v853
        %s856 = sand.u32 %s100, 1
        %s857 = scalar_lea.sflag [#allocation4], %s856
        %s858 = sand.u32 %s100, 1
        %s859 = scalar_lea.vmem [#allocation7], %s858
        // Predicated region
        $region37: #{tpu_custom_call.1} parent=27 // pred_check
          %p860 = pneg %p110
        $region38: #{tpu_custom_call.1} parent=27 // pred_check_branch
          %862 = sbr.rel (%p860) target = $region40
        $region39: #{tpu_custom_call.1} parent=27 // pred_region
          %s864 = ssub.s32 16, 16
          %865 = vsyncadd %s857, %s864
          %s866 = smul.addr %s26, 4
          %s867 = sadd.s32 %s27, %s866
          %s868 = smul.addr %s867, 16
          %s869 = scalar_lea.hbm %s2, %s868
          %s871 = sshll.u32 %s859, 4
          %s872 = int_to_ptr.vmem [resolvable:$true] %s871
          %874 = dma.vmem_to_hbm [thread:$0]  %s872, 16, %s869, %s857
        $region40: #{tpu_custom_call.1} parent=27 // pred_fallthru
          _
      $region28: #{tpu_custom_call.1} parent=5 // pred_fallthru
        _
      %p875 = scmp.le.s32.totalorder 2, %s17
      // Predicated region
      $region41: #{tpu_custom_call.1} parent=5 // pred_check
        %p876 = pneg %p875
      $region42: #{tpu_custom_call.1} parent=5 // pred_check_branch
        %878 = sbr.rel (%p876) target = $region44
      $region43: #{tpu_custom_call.1} parent=5 // pred_region
        %s879 = ssub.s32 %s17, 2
        // Predicated region
        $region45: #{tpu_custom_call.1} parent=43 // pred_check
          %p880 = pneg %p116
        $region46: #{tpu_custom_call.1} parent=43 // pred_check_branch
          %882 = sbr.rel (%p880) target = $region48
        $region47: #{tpu_custom_call.1} parent=43 // pred_region
          %s883 = sand.u32 %s101, 1
          %s884 = scalar_lea.sflag [#allocation4], %s883
          %s885 = sand.u32 %s101, 1
          %s886 = scalar_lea.vmem [#allocation7], %s885
          %887 = dma.done %s884, 16
        $region48: #{tpu_custom_call.1} parent=43 // pred_fallthru
          _
      $region44: #{tpu_custom_call.1} parent=5 // pred_fallthru
        _
    $region6: #{tpu_custom_call.1} parent=1 // loop_footer
      %s21 = sadd.s32 1, %s17
    $region7: #{tpu_custom_call.1} parent=1 // loop_footer_branch
      %16 = sbr.rel target = $region3
    $region8: #{tpu_custom_call.1} parent=1 // loop_exit
      _
    %888 = vsyncpa [#allocation3], 1
    %s889 = scalar_lea.sflag [#allocation3], 1
    %890 = vsyncpa %s889, 1
    %891 = vsyncpa [#allocation6], 1
    %s892 = scalar_lea.sflag [#allocation6], 1
    %893 = vsyncpa %s892, 1
    %894 = vsyncpa [#allocation4], 1
    %s895 = scalar_lea.sflag [#allocation4], 1
    %896 = vsyncpa %s895, 1

</llo_original>
